<compile_context>
chip_gen: v7x
topology: tpu7x:2x2x1
jax: 0.10.0
libtpu: 0.0.40
codegen_flags: <defaults>
</compile_context>

<pallas_src>
import functools

import jax
import jax.numpy as jnp
from jax.experimental import pallas as pl
from jax.experimental.pallas import tpu as pltpu


def _attn_kernel(x_ref, wqkv_ref, wproj_ref, bias_ref, out_ref, *,
                 num_heads: int, head_dim: int, seq_len: int, block_b: int):
    # x_ref:    (block_b*N, C)  token rows for `block_b` batch elements
    # wqkv_ref: (C, 3C)         QKV weight, transposed; Q columns pre-scaled
    # wproj_ref:(C, C)          proj weight, transposed
    # bias_ref: (N, N)          additive spatial bias (f32): -1e9 masked, 0 else
    # out_ref:  (block_b*N, C)
    N = seq_len
    H = num_heads
    hd = head_dim
    C = H * hd
    TB = block_b
    in_dtype = x_ref.dtype

    x = x_ref[...]                       # (TB*N, C)
    wqkv = wqkv_ref[...]                 # (C, 3C)
    wproj = wproj_ref[...]               # (C, C)
    bias = bias_ref[...]                 # (N, N) f32

    # Fused QKV projection: single MXU matmul, M = TB*N rows.
    qkv = jnp.dot(x, wqkv, preferred_element_type=jnp.float32)   # (TB*N, 3C) f32
    qkv = qkv.astype(in_dtype).reshape(TB, N, 3 * C)             # leading-dim split

    head_outs = []
    for h in range(H):
        lo = h * hd
        q = qkv[:, :, lo:lo + hd]                     # (TB, N, hd)
        k = qkv[:, :, C + lo:C + lo + hd]             # (TB, N, hd)
        v = qkv[:, :, 2 * C + lo:2 * C + lo + hd]     # (TB, N, hd)

        # Scores (scale already folded into Wq) + additive spatial mask bias.
        s = jnp.einsum("bnd,bmd->bnm", q, k,
                       preferred_element_type=jnp.float32)        # (TB, N, N) f32
        s = s + bias[None, :, :]

        # Softmax over keys: f32 math, reciprocal on the EUP slot.
        s_max = jnp.max(s, axis=-1, keepdims=True)
        e = jnp.exp(s - s_max)
        p = e * pl.reciprocal(jnp.sum(e, axis=-1, keepdims=True), approx=True)

        o = jnp.einsum("bnm,bmd->bnd", p.astype(in_dtype), v,
                       preferred_element_type=jnp.float32)        # (TB, N, hd)
        head_outs.append(o.astype(in_dtype))

    # Concatenate heads (matches torch transpose(1,2).reshape channel order),
    # then ONE fused output projection with contraction C.
    o_all = jnp.concatenate(head_outs, axis=-1).reshape(TB * N, C)
    out = jnp.dot(o_all, wproj, preferred_element_type=jnp.float32)   # (TB*N, C)

    out_ref[...] = out.astype(out_ref.dtype)


def _pick_block_b(B: int) -> int:
    # Prefer a batch tile that divides B, is sublane-friendly, and leaves >= 2
    # grid steps (megacore parallelism on v7x) when possible.
    for cand in (64, 32, 16, 8):
        if B % cand == 0 and B // cand >= 2:
            return cand
    for cand in (64, 32, 16, 8):
        if B % cand == 0:
            return cand
    return B


def prepare_params(wqkv, wproj, mask_bool, num_heads):
    """One-time parameter preparation (call once, NOT per forward step).

    wqkv:  (3C, C) torch nn.Linear layout (out_features, in_features)
    wproj: (C, C)  torch layout
    mask_bool: (N, N) bool, True = masked (distance^2 > radius^2)
    Returns (wqkv_t, wproj_t, bias) in kernel layout.
    """
    three_c, C = wqkv.shape
    assert three_c == 3 * C
    head_dim = C // num_heads
    scale = head_dim ** (-0.5)
    # Fold the attention scale into the Q output rows of the QKV weight.
    row_scale = jnp.concatenate(
        [jnp.full((C, 1), scale, dtype=wqkv.dtype),
         jnp.ones((2 * C, 1), dtype=wqkv.dtype)], axis=0)
    wqkv_t = (wqkv * row_scale).T                       # (C, 3C)
    wproj_t = wproj.T                                   # (C, C)
    bias = jnp.where(mask_bool, jnp.float32(-1e9), jnp.float32(0.0))  # (N, N)
    return wqkv_t, wproj_t, bias


def spatially_masked_attention(x, wqkv_t, wproj_t, bias, *, num_heads,
                               block_b=None):
    """x: (B, N, C); wqkv_t: (C, 3C); wproj_t: (C, C); bias: (N, N) f32."""
    B, N, C = x.shape
    assert C % num_heads == 0
    head_dim = C // num_heads

    if block_b is None:
        block_b = _pick_block_b(B)
    assert B % block_b == 0
    rows = block_b * N
    assert rows % 8 == 0 or block_b == B, "sublane-unfriendly batch tile"

    x2 = x.reshape(B * N, C)   # free row-major reshape in the wrapper

    kernel = functools.partial(_attn_kernel, num_heads=num_heads,
                               head_dim=head_dim, seq_len=N, block_b=block_b)

    out2 = pl.pallas_call(
        kernel,
        out_shape=jax.ShapeDtypeStruct((B * N, C), x.dtype),
        grid_spec=pltpu.PrefetchScalarGridSpec(
            num_scalar_prefetch=0,
            grid=(B // block_b,),
            in_specs=[
                pl.BlockSpec((rows, C), lambda b: (b, 0)),     # token slab
                pl.BlockSpec((C, 3 * C), lambda b: (0, 0)),    # Wqkv^T (invariant)
                pl.BlockSpec((C, C), lambda b: (0, 0)),        # Wproj^T (invariant)
                pl.BlockSpec((N, N), lambda b: (0, 0)),        # spatial bias
            ],
            out_specs=pl.BlockSpec((rows, C), lambda b: (b, 0)),
        ),
        compiler_params=pltpu.CompilerParams(
            dimension_semantics=("parallel",),
            vmem_limit_bytes=32 * 1024 * 1024),
    )(x2, wqkv_t, wproj_t, bias)
    return out2.reshape(B, N, C)


def build_spatial_mask(patch_h, patch_w, radius_squared):
    ii, jj = jnp.meshgrid(jnp.arange(patch_h, dtype=jnp.float32),
                          jnp.arange(patch_w, dtype=jnp.float32), indexing="ij")
    coords = jnp.stack([ii.reshape(-1), jj.reshape(-1)], axis=-1)   # (N, 2)
    d2 = jnp.sum((coords[None, :, :] - coords[:, None, :]) ** 2, axis=-1)
    return d2 > radius_squared   # bool, True = masked


def reference_forward(x, wqkv, wproj, mask_bool, num_heads):
    B, N, C = x.shape
    hd = C // num_heads
    qkv = (x @ wqkv.T).reshape(B, N, 3, num_heads, hd).transpose(2, 0, 3, 1, 4)
    q, k, v = qkv[0], qkv[1], qkv[2]
    s = jnp.einsum("bhnd,bhmd->bhnm", q, k) * (hd ** -0.5)
    s = jnp.where(mask_bool[None, None], -1e9, s)
    p = jax.nn.softmax(s, axis=-1)
    o = jnp.einsum("bhnm,bhmd->bhnd", p, v).transpose(0, 2, 1, 3).reshape(B, N, C)
    return o @ wproj.T


if __name__ == "__main__":
    B = 2
    dim = 32
    num_heads = 2
    patch_h, patch_w = 4, 4
    N = patch_h * patch_w
    radius_squared = 2.0

    key = jax.random.PRNGKey(0)
    kx, kq, kp, kx2 = jax.random.split(key, 4)

    x = jax.random.normal(kx, (B, N, dim), dtype=jnp.float32)
    # torch Linear layout: (out_features, in_features)
    wqkv = jax.random.normal(kq, (3 * dim, dim), dtype=jnp.float32) * 0.05
    wproj = jax.random.normal(kp, (dim, dim), dtype=jnp.float32) * 0.05

    mask_bool = build_spatial_mask(patch_h, patch_w, radius_squared)
    wqkv_t, wproj_t, bias = prepare_params(wqkv, wproj, mask_bool, num_heads)

    # config 1: B=2 (single grid step, block_b = B)
    out = spatially_masked_attention(x, wqkv_t, wproj_t, bias,
                                     num_heads=num_heads)
    out = jax.block_until_ready(out)
    ref = reference_forward(x, wqkv, wproj, mask_bool, num_heads)
    assert out.shape == (B, N, dim)
    assert jnp.allclose(out, ref, atol=2e-3, rtol=2e-3), "mismatch vs reference (B=2)"

    # config 2: B=16 exercises the multi-step batched-tile grid (block_b=8).
    B2 = 16
    x_big = jax.random.normal(kx2, (B2, N, dim), dtype=jnp.float32)
    out2 = jax.block_until_ready(
        spatially_masked_attention(x_big, wqkv_t, wproj_t, bias,
                                   num_heads=num_heads))
    ref2 = reference_forward(x_big, wqkv, wproj, mask_bool, num_heads)
    assert jnp.allclose(out2, ref2, atol=2e-3, rtol=2e-3), "mismatch vs reference (B=16)"

    print("KERNEL_OK")
</pallas_src>

<mosaic_0001>
module attributes {stable_mosaic.version = 11 : i64} {
  func.func @_attn_kernel(%arg0: i32, %arg1: memref<32x32xf32, #tpu.memory_space<vmem>>, %arg2: memref<32x96xf32, #tpu.memory_space<vmem>>, %arg3: memref<32x32xf32, #tpu.memory_space<vmem>>, %arg4: memref<16x16xf32, #tpu.memory_space<vmem>>, %arg5: memref<32x32xf32, #tpu.memory_space<vmem>>) attributes {dimension_semantics = [#tpu.dimension_semantics<parallel>], iteration_bounds = array<i64: 1>, scalar_prefetch = 0 : i64, scratch_operands = 0 : i64, tpu.core_type = #tpu.core_type<tc>, window_params = [{transform_indices = @transform_0, window_bounds = array<i64: 32, 32>}, {pipeline_mode = #tpu.pipeline_mode<synchronous>, transform_indices = @transform_1, window_bounds = array<i64: 32, 96>}, {pipeline_mode = #tpu.pipeline_mode<synchronous>, transform_indices = @transform_2, window_bounds = array<i64: 32, 32>}, {pipeline_mode = #tpu.pipeline_mode<synchronous>, transform_indices = @transform_3, window_bounds = array<i64: 16, 16>}, {transform_indices = @transform_4, window_bounds = array<i64: 32, 32>}]} {
    %c0 = arith.constant 0 : index
    %c0_0 = arith.constant 0 : index
    %0 = vector.load %arg1[%c0, %c0_0] : memref<32x32xf32, #tpu.memory_space<vmem>>, vector<32x32xf32>
    %c0_1 = arith.constant 0 : index
    %c0_2 = arith.constant 0 : index
    %1 = vector.load %arg2[%c0_1, %c0_2] : memref<32x96xf32, #tpu.memory_space<vmem>>, vector<32x96xf32>
    %c0_3 = arith.constant 0 : index
    %c0_4 = arith.constant 0 : index
    %2 = vector.load %arg3[%c0_3, %c0_4] : memref<32x32xf32, #tpu.memory_space<vmem>>, vector<32x32xf32>
    %c0_5 = arith.constant 0 : index
    %c0_6 = arith.constant 0 : index
    %3 = vector.load %arg4[%c0_5, %c0_6] : memref<16x16xf32, #tpu.memory_space<vmem>>, vector<16x16xf32>
    %cst = arith.constant dense<0.000000e+00> : vector<32x96xf32>
    %4 = tpu.matmul %0, %1, %cst {dimension_numbers = #tpu.dot_dimension_numbers<[1], [0], [0], [1], [0, 0, 1, 1], [], []>} : vector<32x32xf32>, vector<32x96xf32>, vector<32x96xf32> -> vector<32x96xf32>
    %5 = vector.shape_cast %4 : vector<32x96xf32> to vector<2x16x96xf32>
    %6 = vector.extract_strided_slice %5 {offsets = [0, 0, 0], sizes = [2, 16, 16], strides = [1, 1, 1]} : vector<2x16x96xf32> to vector<2x16x16xf32>
    %7 = vector.extract_strided_slice %5 {offsets = [0, 0, 32], sizes = [2, 16, 16], strides = [1, 1, 1]} : vector<2x16x96xf32> to vector<2x16x16xf32>
    %8 = vector.extract_strided_slice %5 {offsets = [0, 0, 64], sizes = [2, 16, 16], strides = [1, 1, 1]} : vector<2x16x96xf32> to vector<2x16x16xf32>
    "tpu.trace_start"() <{level = 10 : i32, message = "bnd,bmd->bnm"}> : () -> ()
    %cst_7 = arith.constant dense<0.000000e+00> : vector<2x16x16xf32>
    %9 = tpu.matmul %6, %7, %cst_7 {dimension_numbers = #tpu.dot_dimension_numbers<[2], [2], [1], [1], [0, 0, 0, 1, 1, 1], [0], [0]>} : vector<2x16x16xf32>, vector<2x16x16xf32>, vector<2x16x16xf32> -> vector<2x16x16xf32>
    "tpu.trace_stop"() : () -> ()
    %10 = vector.shape_cast %3 : vector<16x16xf32> to vector<1x16x16xf32>
    %11 = vector.broadcast %10 : vector<1x16x16xf32> to vector<2x16x16xf32>
    %12 = arith.addf %9, %11 : vector<2x16x16xf32>
    %cst_8 = arith.constant dense<0xFF800000> : vector<2x16xf32>
    %13 = vector.multi_reduction <maximumf>, %12, %cst_8 [2] : vector<2x16x16xf32> to vector<2x16xf32>
    %14 = vector.shape_cast %13 : vector<2x16xf32> to vector<2x16x1xf32>
    %15 = vector.broadcast %14 : vector<2x16x1xf32> to vector<2x16x16xf32>
    %16 = arith.subf %12, %15 : vector<2x16x16xf32>
    %17 = math.exp %16 : vector<2x16x16xf32>
    %cst_9 = arith.constant dense<0.000000e+00> : vector<2x16xf32>
    %18 = vector.multi_reduction <add>, %17, %cst_9 [2] : vector<2x16x16xf32> to vector<2x16xf32>
    %19 = vector.shape_cast %18 : vector<2x16xf32> to vector<2x16x1xf32>
    %20 = tpu.reciprocal %19 {approx = true} : vector<2x16x1xf32> -> vector<2x16x1xf32>
    %21 = vector.broadcast %20 : vector<2x16x1xf32> to vector<2x16x16xf32>
    %22 = arith.mulf %17, %21 : vector<2x16x16xf32>
    "tpu.trace_start"() <{level = 10 : i32, message = "bnm,bmd->bnd"}> : () -> ()
    %cst_10 = arith.constant dense<0.000000e+00> : vector<2x16x16xf32>
    %23 = tpu.matmul %22, %8, %cst_10 {dimension_numbers = #tpu.dot_dimension_numbers<[2], [1], [1], [2], [0, 0, 0, 1, 1, 2], [0], [0]>} : vector<2x16x16xf32>, vector<2x16x16xf32>, vector<2x16x16xf32> -> vector<2x16x16xf32>
    "tpu.trace_stop"() : () -> ()
    %24 = vector.extract_strided_slice %5 {offsets = [0, 0, 16], sizes = [2, 16, 16], strides = [1, 1, 1]} : vector<2x16x96xf32> to vector<2x16x16xf32>
    %25 = vector.extract_strided_slice %5 {offsets = [0, 0, 48], sizes = [2, 16, 16], strides = [1, 1, 1]} : vector<2x16x96xf32> to vector<2x16x16xf32>
    %26 = vector.extract_strided_slice %5 {offsets = [0, 0, 80], sizes = [2, 16, 16], strides = [1, 1, 1]} : vector<2x16x96xf32> to vector<2x16x16xf32>
    "tpu.trace_start"() <{level = 10 : i32, message = "bnd,bmd->bnm"}> : () -> ()
    %cst_11 = arith.constant dense<0.000000e+00> : vector<2x16x16xf32>
    %27 = tpu.matmul %24, %25, %cst_11 {dimension_numbers = #tpu.dot_dimension_numbers<[2], [2], [1], [1], [0, 0, 0, 1, 1, 1], [0], [0]>} : vector<2x16x16xf32>, vector<2x16x16xf32>, vector<2x16x16xf32> -> vector<2x16x16xf32>
    "tpu.trace_stop"() : () -> ()
    %28 = vector.shape_cast %3 : vector<16x16xf32> to vector<1x16x16xf32>
    %29 = vector.broadcast %28 : vector<1x16x16xf32> to vector<2x16x16xf32>
    %30 = arith.addf %27, %29 : vector<2x16x16xf32>
    %cst_12 = arith.constant dense<0xFF800000> : vector<2x16xf32>
    %31 = vector.multi_reduction <maximumf>, %30, %cst_12 [2] : vector<2x16x16xf32> to vector<2x16xf32>
    %32 = vector.shape_cast %31 : vector<2x16xf32> to vector<2x16x1xf32>
    %33 = vector.broadcast %32 : vector<2x16x1xf32> to vector<2x16x16xf32>
    %34 = arith.subf %30, %33 : vector<2x16x16xf32>
    %35 = math.exp %34 : vector<2x16x16xf32>
    %cst_13 = arith.constant dense<0.000000e+00> : vector<2x16xf32>
    %36 = vector.multi_reduction <add>, %35, %cst_13 [2] : vector<2x16x16xf32> to vector<2x16xf32>
    %37 = vector.shape_cast %36 : vector<2x16xf32> to vector<2x16x1xf32>
    %38 = tpu.reciprocal %37 {approx = true} : vector<2x16x1xf32> -> vector<2x16x1xf32>
    %39 = vector.broadcast %38 : vector<2x16x1xf32> to vector<2x16x16xf32>
    %40 = arith.mulf %35, %39 : vector<2x16x16xf32>
    "tpu.trace_start"() <{level = 10 : i32, message = "bnm,bmd->bnd"}> : () -> ()
    %cst_14 = arith.constant dense<0.000000e+00> : vector<2x16x16xf32>
    %41 = tpu.matmul %40, %26, %cst_14 {dimension_numbers = #tpu.dot_dimension_numbers<[2], [1], [1], [2], [0, 0, 0, 1, 1, 2], [0], [0]>} : vector<2x16x16xf32>, vector<2x16x16xf32>, vector<2x16x16xf32> -> vector<2x16x16xf32>
    "tpu.trace_stop"() : () -> ()
    %42 = tpu.concatenate %23, %41 in 2 : vector<2x16x16xf32>, vector<2x16x16xf32> -> vector<2x16x32xf32>
    %43 = vector.shape_cast %42 : vector<2x16x32xf32> to vector<32x32xf32>
    %cst_15 = arith.constant dense<0.000000e+00> : vector<32x32xf32>
    %44 = tpu.matmul %43, %2, %cst_15 {dimension_numbers = #tpu.dot_dimension_numbers<[1], [0], [0], [1], [0, 0, 1, 1], [], []>} : vector<32x32xf32>, vector<32x32xf32>, vector<32x32xf32> -> vector<32x32xf32>
    %c0_16 = arith.constant 0 : index
    %c0_17 = arith.constant 0 : index
    %45 = vector.load %arg5[%c0_16, %c0_17] : memref<32x32xf32, #tpu.memory_space<vmem>>, vector<32x32xf32>
    tpu.vector_store %arg5[%c0_16, %c0_17], %44 {strides = array<i32>} : memref<32x32xf32, #tpu.memory_space<vmem>>, vector<32x32xf32>,
    return
  }
  func.func @transform_0(%arg0: i32) -> (i32, i32) {
    %c0_i32 = arith.constant 0 : i32
    %c0_i32_0 = arith.constant 0 : i32
    return %arg0, %c0_i32 : i32, i32
  }
  func.func @transform_1(%arg0: i32) -> (i32, i32) {
    %c0_i32 = arith.constant 0 : i32
    %c0_i32_0 = arith.constant 0 : i32
    %c0_i32_1 = arith.constant 0 : i32
    return %c0_i32, %c0_i32_0 : i32, i32
  }
  func.func @transform_2(%arg0: i32) -> (i32, i32) {
    %c0_i32 = arith.constant 0 : i32
    %c0_i32_0 = arith.constant 0 : i32
    %c0_i32_1 = arith.constant 0 : i32
    return %c0_i32, %c0_i32_0 : i32, i32
  }
  func.func @transform_3(%arg0: i32) -> (i32, i32) {
    %c0_i32 = arith.constant 0 : i32
    %c0_i32_0 = arith.constant 0 : i32
    %c0_i32_1 = arith.constant 0 : i32
    return %c0_i32, %c0_i32_0 : i32, i32
  }
  func.func @transform_4(%arg0: i32) -> (i32, i32) {
    %c0_i32 = arith.constant 0 : i32
    %c0_i32_0 = arith.constant 0 : i32
    return %arg0, %c0_i32 : i32, i32
  }
}

</mosaic_0001>

<llo_original>
// kernel: tpu_custom_call.1
$region0: #{tpu_custom_call.1}
  #allocation0 [shape = 'u32[]', space=smem, size = 0x4, offset = 0x4, fixed_abs, tag = 'smem constant byte address 0x4 - core index']
  #allocation1 [shape = 'u32[144,128]{1,0:T(1,128)}', space=vmem, size = 0x12000, scoped, tag = 'internal scratch']
  %s0 = inlined_call_operand.hbm [shape: f32[32,32], index: 0, kind: input, shape index: {}]
  %s1 = inlined_call_operand.hbm [shape: f32[32,96], index: 1, kind: input, shape index: {}]
  %s2 = inlined_call_operand.hbm [shape: f32[32,32], index: 2, kind: input, shape index: {}]
  %s3 = inlined_call_operand.hbm [shape: f32[16,16], index: 3, kind: input, shape index: {}]
  %s4 = inlined_call_operand.hbm [shape: f32[32,32], index: 4, kind: output, shape index: {}]
  %s5 = sld [smem:[#allocation0]]
  $region42: #{tpu_custom_call.1} parent=0
    _
  %s7 = ssub.s32 1, %s5
  %s8 = scalar_select 0, %s7, %s5
  $region1: #{tpu_custom_call.1} parent=0
    #allocation2 [shape = 'u8[16384]{0}', space=vmem, size = 0x4000, scoped, tag = 'input window, operand 0, single buffered']
    #allocation3 [shape = 's32[1]{0}', space=sflag, size = 0x4, scoped, tag = 'scoped memory for tpu_custom_call.1']
    #allocation4 [shape = 's32[1]{0}', space=sflag, size = 0x4, scoped, tag = 'scoped memory for tpu_custom_call.1']
    #allocation5 [shape = 'u8[16384]{0}', space=vmem, size = 0x4000, scoped, tag = 'input window, operand 1, single buffered']
    #allocation6 [shape = 's32[1]{0}', space=sflag, size = 0x4, scoped, tag = 'scoped memory for tpu_custom_call.1']
    #allocation7 [shape = 'u8[16384]{0}', space=vmem, size = 0x4000, scoped, tag = 'input window, operand 2, single buffered']
    #allocation8 [shape = 'u8[8192]{0}', space=vmem, size = 0x2000, scoped, tag = 'input window, operand 3, single buffered']
    #allocation9 [shape = 's32[1]{0}', space=sflag, size = 0x4, scoped, tag = 'scoped memory for tpu_custom_call.1']
    #allocation10 [shape = 'u8[16384]{0}', space=vmem, size = 0x4000, scoped, tag = 'output window, operand 0, single buffered']
    %9 = vsyncpa [#allocation3], 0
    %10 = vsyncpa [#allocation6], 0
    %11 = vsyncpa [#allocation9], 0
    %12 = vsyncpa [#allocation4], 0
    // Predicated region
    $region2: #{tpu_custom_call.1} parent=1 // pred_check
      _
    $region3: #{tpu_custom_call.1} parent=1 // pred_check_branch
      %14 = sbr.rel (0) target = $region5
    $region4: #{tpu_custom_call.1} parent=1 // pred_region
      %s16 = ssub.s32 512, 512
      %17 = vsyncadd [#allocation3], %s16
      %s18 = sshll.u32 [#allocation2], 4
      %s19 = int_to_ptr.vmem [resolvable:$true] %s18
      %24 = dma.hbm_to_vmem [thread:$0]  %s0, 512, %s19, [#allocation3], 128, 128, 8
    $region5: #{tpu_custom_call.1} parent=1 // pred_fallthru
      _
    // Predicated region
    $region6: #{tpu_custom_call.1} parent=1 // pred_check
      _
    $region7: #{tpu_custom_call.1} parent=1 // pred_check_branch
      %26 = sbr.rel (0) target = $region9
    $region8: #{tpu_custom_call.1} parent=1 // pred_region
      %s28 = ssub.s32 512, 512
      %29 = vsyncadd [#allocation6], %s28
      %s30 = sshll.u32 [#allocation5], 4
      %s31 = int_to_ptr.vmem [resolvable:$true] %s30
      %36 = dma.hbm_to_vmem [thread:$0]  %s1, 512, %s31, [#allocation6], 128, 128, 8
    $region9: #{tpu_custom_call.1} parent=1 // pred_fallthru
      _
    // Predicated region
    $region10: #{tpu_custom_call.1} parent=1 // pred_check
      _
    $region11: #{tpu_custom_call.1} parent=1 // pred_check_branch
      %38 = sbr.rel (0) target = $region13
    $region12: #{tpu_custom_call.1} parent=1 // pred_region
      %s40 = ssub.s32 512, 512
      %41 = vsyncadd [#allocation6], %s40
      %s42 = sshll.u32 [#allocation7], 4
      %s43 = int_to_ptr.vmem [resolvable:$true] %s42
      %48 = dma.hbm_to_vmem [thread:$0]  %s2, 512, %s43, [#allocation6], 128, 128, 8
    $region13: #{tpu_custom_call.1} parent=1 // pred_fallthru
      _
    // Predicated region
    $region14: #{tpu_custom_call.1} parent=1 // pred_check
      _
    $region15: #{tpu_custom_call.1} parent=1 // pred_check_branch
      %50 = sbr.rel (0) target = $region17
    $region16: #{tpu_custom_call.1} parent=1 // pred_region
      %s52 = ssub.s32 256, 256
      %53 = vsyncadd [#allocation9], %s52
      %s54 = sshll.u32 [#allocation8], 4
      %s55 = int_to_ptr.vmem [resolvable:$true] %s54
      %60 = dma.hbm_to_vmem [thread:$0]  %s3, 256, %s55, [#allocation9], 128, 128, 8
    $region17: #{tpu_custom_call.1} parent=1 // pred_fallthru
      _
    // Predicated region
    $region18: #{tpu_custom_call.1} parent=1 // pred_check
      _
    $region19: #{tpu_custom_call.1} parent=1 // pred_check_branch
      %62 = sbr.rel (0) target = $region21
    $region20: #{tpu_custom_call.1} parent=1 // pred_region
      %63 = dma.done [#allocation3], 512
    $region21: #{tpu_custom_call.1} parent=1 // pred_fallthru
      _
    // Predicated region
    $region22: #{tpu_custom_call.1} parent=1 // pred_check
      _
    $region23: #{tpu_custom_call.1} parent=1 // pred_check_branch
      %65 = sbr.rel (0) target = $region25
    $region24: #{tpu_custom_call.1} parent=1 // pred_region
      %66 = dma.done [#allocation6], 512
    $region25: #{tpu_custom_call.1} parent=1 // pred_fallthru
      _
    // Predicated region
    $region26: #{tpu_custom_call.1} parent=1 // pred_check
      _
    $region27: #{tpu_custom_call.1} parent=1 // pred_check_branch
      %68 = sbr.rel (0) target = $region29
    $region28: #{tpu_custom_call.1} parent=1 // pred_region
      %69 = dma.done [#allocation6], 512
    $region29: #{tpu_custom_call.1} parent=1 // pred_fallthru
      _
    // Predicated region
    $region30: #{tpu_custom_call.1} parent=1 // pred_check
      _
    $region31: #{tpu_custom_call.1} parent=1 // pred_check_branch
      %71 = sbr.rel (0) target = $region33
    $region32: #{tpu_custom_call.1} parent=1 // pred_region
      %72 = dma.done [#allocation9], 256
    $region33: #{tpu_custom_call.1} parent=1 // pred_fallthru
      _
    %v73 = vld [vmem:[#allocation2] sm:$0xff]
    %v74 = vld [vmem:[#allocation2 + $0x8] sm:$0xff]
    %v75 = vld [vmem:[#allocation2 + $0x10] sm:$0xff]
    %v76 = vld [vmem:[#allocation2 + $0x18] sm:$0xff]
    %v77 = vld [vmem:[#allocation5] sm:$0xff]
    %v78 = vld [vmem:[#allocation5 + $0x8] sm:$0xff]
    %v79 = vld [vmem:[#allocation5 + $0x10] sm:$0xff]
    %v80 = vld [vmem:[#allocation5 + $0x18] sm:$0xff]
    %v81 = vld [vmem:[#allocation7] sm:$0xff]
    %v82 = vld [vmem:[#allocation7 + $0x8] sm:$0xff]
    %v83 = vld [vmem:[#allocation7 + $0x10] sm:$0xff]
    %v84 = vld [vmem:[#allocation7 + $0x18] sm:$0xff]
    %v85 = vld [vmem:[#allocation8] sm:$0xff]
    %v86 = vld [vmem:[#allocation8 + $0x8] sm:$0xff]
    %vm87 = vcmask 261120
    %v89 = vsel %vm87, %v73, 0
    %v92 = vsel %vm87, %v74, 0
    %v95 = vsel %vm87, %v75, 0
    %v98 = vsel %vm87, %v76, 0
    %100 = vmatprep.subr.mxu0 0.0
    %101 = vmatpush1.msra.mxu0 %v77
    %102 = vmatprep.subr.mxu0 0.0
    %103 = vmatpush1.msra.mxu0 %v78
    %104 = vmatprep.subr.mxu0 0.0
    %105 = vmatpush1.msra.mxu0 %v79
    %106 = vmatprep.subr.mxu0 0.0
    %107 = vmatpush1.msra.mxu0 %v80
    %108 = vmatprep.subr.mxu0 0.0
    %109 = vmatpush1.msra.mxu0 0.0
    %110 = vmatprep.subr.mxu0 0.0
    %111 = vmatpush1.msra.mxu0 0.0
    %112 = vmatprep.subr.mxu0 0.0
    %113 = vmatpush1.msra.mxu0 0.0
    %114 = vmatprep.subr.mxu0 0.0
    %115 = vmatpush1.msra.mxu0 0.0
    %116 = vmatprep.subr.mxu0 0.0
    %117 = vmatpush1.msra.mxu0 0.0
    %118 = vmatprep.subr.mxu0 0.0
    %119 = vmatpush1.msra.mxu0 0.0
    %120 = vmatprep.subr.mxu0 0.0
    %121 = vmatpush1.msra.mxu0 0.0
    %122 = vmatprep.subr.mxu0 0.0
    %123 = vmatpush1.msra.mxu0 0.0
    %124 = vmatprep.subr.mxu0 0.0
    %125 = vmatpush1.msra.mxu0 0.0
    %126 = vmatprep.subr.mxu0 0.0
    %127 = vmatpush1.msra.mxu0 0.0
    %128 = vmatprep.subr.mxu0 0.0
    %129 = vmatpush1.msra.mxu0 0.0
    %130 = vmatprep.subr.mxu0 0.0
    %131 = vmatpush1.msra.mxu0 0.0
    %132 = vmatprep.subr.mxu0 0.0
    %133 = vmatpush1.msra.mxu0 0.0
    %134 = vmatprep.subr.mxu0 0.0
    %135 = vmatpush1.msra.mxu0 0.0
    %136 = vmatprep.subr.mxu0 0.0
    %137 = vmatpush1.msra.mxu0 0.0
    %138 = vmatprep.subr.mxu0 0.0
    %139 = vmatpush1.msra.mxu0 0.0
    %140 = vmatprep.subr.mxu0 0.0
    %141 = vmatpush1.msra.mxu0 0.0
    %142 = vmatprep.subr.mxu0 0.0
    %143 = vmatpush1.msra.mxu0 0.0
    %144 = vmatprep.subr.mxu0 0.0
    %145 = vmatpush1.msra.mxu0 0.0
    %146 = vmatprep.subr.mxu0 0.0
    %147 = vmatpush1.msra.mxu0 0.0
    %148 = vmatprep.subr.mxu0 0.0
    %149 = vmatpush1.msra.mxu0 0.0
    %150 = vmatprep.subr.mxu0 0.0
    %151 = vmatpush1.msra.mxu0 0.0
    %152 = vmatprep.subr.mxu0 0.0
    %153 = vmatpush1.msra.mxu0 0.0
    %154 = vmatprep.subr.mxu0 0.0
    %155 = vmatpush1.msra.mxu0 0.0
    %156 = vmatprep.subr.mxu0 0.0
    %157 = vmatpush1.msra.mxu0 0.0
    %158 = vmatprep.subr.mxu0 0.0
    %159 = vmatpush1.msra.mxu0 0.0
    %160 = vmatprep.subr.mxu0 0.0
    %161 = vmatpush1.msra.mxu0 0.0
    %162 = vmatprep.subr.mxu0 0.0
    %163 = vmatpush1.msra.mxu0 0.0
    %164 = vmatprep.mubr.f32.mxu0 0.0
    %165 = vmatmul.mubr.f32.gmra.mrb[0].mxu0 %v89
    %v166 = vpop.f32.mrb[0].mxu0
    %v167 = vadd.f32 0.0, %v166
    %v168 = vpop.f32.mrb[0].mxu0
    %169 = vmatprep.mubr.f32.mxu0 0.0
    %170 = vmatmul.mubr.f32.gmra.mrb[0].mxu0 %v92
    %v171 = vpop.f32.mrb[0].mxu0
    %v172 = vadd.f32 0.0, %v171
    %v173 = vpop.f32.mrb[0].mxu0
    %174 = vmatprep.mubr.f32.mxu0 0.0
    %175 = vmatmul.mubr.f32.gmra.mrb[0].mxu0 %v95
    %v176 = vpop.f32.mrb[0].mxu0
    %v177 = vadd.f32 0.0, %v176
    %v178 = vpop.f32.mrb[0].mxu0
    %179 = vmatprep.mubr.f32.mxu0 0.0
    %180 = vmatmul.mubr.f32.gmra.mrb[0].mxu0 %v98
    %v181 = vpop.f32.mrb[0].mxu0
    %v182 = vadd.f32 0.0, %v181
    %v183 = vpop.f32.mrb[0].mxu0
    %184 = vdwg.mxu0
    %187 = vrot.lane.b32.xlu0 %v167, 96
    %v188 = vpop.permute.xlu0 %187
    %189 = vrot.lane.b32.xlu0 %v172, 96
    %v190 = vpop.permute.xlu0 %189
    %vm191 = vcmask 130048
    %v192 = vsel %vm191, %v167, 0
    %v194 = vsel %vm191, %v172, 0
    %v196 = vsel %vm191, %v188, 0
    %v198 = vsel %vm191, %v190, 0
    %200 = vmatprep.subr.mxu0 0.0
    %201 = vmatpush1.xpose.msra.mxu0 %v196
    %202 = vmatprep.subr.mxu0 0.0
    %203 = vmatpush1.xpose.msra.mxu0 %v198
    %204 = vmatprep.subr.mxu0 0.0
    %205 = vmatpush1.xpose.msra.mxu0 0.0
    %206 = vmatprep.subr.mxu0 0.0
    %207 = vmatpush1.xpose.msra.mxu0 0.0
    %208 = vmatprep.subr.mxu0 0.0
    %209 = vmatpush1.xpose.msra.mxu0 0.0
    %210 = vmatprep.subr.mxu0 0.0
    %211 = vmatpush1.xpose.msra.mxu0 0.0
    %212 = vmatprep.subr.mxu0 0.0
    %213 = vmatpush1.xpose.msra.mxu0 0.0
    %214 = vmatprep.subr.mxu0 0.0
    %215 = vmatpush1.xpose.msra.mxu0 0.0
    %216 = vmatprep.subr.mxu0 0.0
    %217 = vmatpush1.xpose.msra.mxu0 0.0
    %218 = vmatprep.subr.mxu0 0.0
    %219 = vmatpush1.xpose.msra.mxu0 0.0
    %220 = vmatprep.subr.mxu0 0.0
    %221 = vmatpush1.xpose.msra.mxu0 0.0
    %222 = vmatprep.subr.mxu0 0.0
    %223 = vmatpush1.xpose.msra.mxu0 0.0
    %224 = vmatprep.subr.mxu0 0.0
    %225 = vmatpush1.xpose.msra.mxu0 0.0
    %226 = vmatprep.subr.mxu0 0.0
    %227 = vmatpush1.xpose.msra.mxu0 0.0
    %228 = vmatprep.subr.mxu0 0.0
    %229 = vmatpush1.xpose.msra.mxu0 0.0
    %230 = vmatprep.subr.mxu0 0.0
    %231 = vmatpush1.xpose.msra.mxu0 0.0
    %232 = vmatprep.subr.mxu0 0.0
    %233 = vmatpush1.xpose.msra.mxu0 0.0
    %234 = vmatprep.subr.mxu0 0.0
    %235 = vmatpush1.xpose.msra.mxu0 0.0
    %236 = vmatprep.subr.mxu0 0.0
    %237 = vmatpush1.xpose.msra.mxu0 0.0
    %238 = vmatprep.subr.mxu0 0.0
    %239 = vmatpush1.xpose.msra.mxu0 0.0
    %240 = vmatprep.subr.mxu0 0.0
    %241 = vmatpush1.xpose.msra.mxu0 0.0
    %242 = vmatprep.subr.mxu0 0.0
    %243 = vmatpush1.xpose.msra.mxu0 0.0
    %244 = vmatprep.subr.mxu0 0.0
    %245 = vmatpush1.xpose.msra.mxu0 0.0
    %246 = vmatprep.subr.mxu0 0.0
    %247 = vmatpush1.xpose.msra.mxu0 0.0
    %248 = vmatprep.subr.mxu0 0.0
    %249 = vmatpush1.xpose.msra.mxu0 0.0
    %250 = vmatprep.subr.mxu0 0.0
    %251 = vmatpush1.xpose.msra.mxu0 0.0
    %252 = vmatprep.subr.mxu0 0.0
    %253 = vmatpush1.xpose.msra.mxu0 0.0
    %254 = vmatprep.subr.mxu0 0.0
    %255 = vmatpush1.xpose.msra.mxu0 0.0
    %256 = vmatprep.subr.mxu0 0.0
    %257 = vmatpush1.xpose.msra.mxu0 0.0
    %258 = vmatprep.subr.mxu0 0.0
    %259 = vmatpush1.xpose.msra.mxu0 0.0
    %260 = vmatprep.subr.mxu0 0.0
    %261 = vmatpush1.xpose.msra.mxu0 0.0
    %262 = vmatprep.subr.mxu0 0.0
    %263 = vmatpush1.xpose.msra.mxu0 0.0
    %264 = vmatprep.mubr.f32.mxu0 0.0
    %265 = vmatmul.mubr.f32.gmra.mrb[0].mxu0 %v192
    %v266 = vpop.f32.mrb[0].mxu0
    %v267 = vadd.f32 %v85, %v266
    %v268 = vpop.f32.mrb[0].mxu0
    %269 = vmatprep.mubr.f32.mxu0 0.0
    %270 = vmatmul.mubr.f32.gmra.mrb[0].mxu0 %v194
    %v271 = vpop.f32.mrb[0].mxu0
    %v272 = vadd.f32 %v86, %v271
    %v273 = vpop.f32.mrb[0].mxu0
    %274 = vdwg.mxu0
    %277 = vrot.lane.b32.xlu0 %v177, 96
    %v278 = vpop.permute.xlu0 %277
    %279 = vrot.lane.b32.xlu0 %v182, 96
    %v280 = vpop.permute.xlu0 %279
    %v281 = vsel %vm191, %v177, 0
    %v283 = vsel %vm191, %v182, 0
    %v285 = vsel %vm191, %v278, 0
    %v287 = vsel %vm191, %v280, 0
    %289 = vmatprep.subr.mxu0 0.0
    %290 = vmatpush1.xpose.msra.mxu0 %v285
    %291 = vmatprep.subr.mxu0 0.0
    %292 = vmatpush1.xpose.msra.mxu0 %v287
    %293 = vmatprep.subr.mxu0 0.0
    %294 = vmatpush1.xpose.msra.mxu0 0.0
    %295 = vmatprep.subr.mxu0 0.0
    %296 = vmatpush1.xpose.msra.mxu0 0.0
    %297 = vmatprep.subr.mxu0 0.0
    %298 = vmatpush1.xpose.msra.mxu0 0.0
    %299 = vmatprep.subr.mxu0 0.0
    %300 = vmatpush1.xpose.msra.mxu0 0.0
    %301 = vmatprep.subr.mxu0 0.0
    %302 = vmatpush1.xpose.msra.mxu0 0.0
    %303 = vmatprep.subr.mxu0 0.0
    %304 = vmatpush1.xpose.msra.mxu0 0.0
    %305 = vmatprep.subr.mxu0 0.0
    %306 = vmatpush1.xpose.msra.mxu0 0.0
    %307 = vmatprep.subr.mxu0 0.0
    %308 = vmatpush1.xpose.msra.mxu0 0.0
    %309 = vmatprep.subr.mxu0 0.0
    %310 = vmatpush1.xpose.msra.mxu0 0.0
    %311 = vmatprep.subr.mxu0 0.0
    %312 = vmatpush1.xpose.msra.mxu0 0.0
    %313 = vmatprep.subr.mxu0 0.0
    %314 = vmatpush1.xpose.msra.mxu0 0.0
    %315 = vmatprep.subr.mxu0 0.0
    %316 = vmatpush1.xpose.msra.mxu0 0.0
    %317 = vmatprep.subr.mxu0 0.0
    %318 = vmatpush1.xpose.msra.mxu0 0.0
    %319 = vmatprep.subr.mxu0 0.0
    %320 = vmatpush1.xpose.msra.mxu0 0.0
    %321 = vmatprep.subr.mxu0 0.0
    %322 = vmatpush1.xpose.msra.mxu0 0.0
    %323 = vmatprep.subr.mxu0 0.0
    %324 = vmatpush1.xpose.msra.mxu0 0.0
    %325 = vmatprep.subr.mxu0 0.0
    %326 = vmatpush1.xpose.msra.mxu0 0.0
    %327 = vmatprep.subr.mxu0 0.0
    %328 = vmatpush1.xpose.msra.mxu0 0.0
    %329 = vmatprep.subr.mxu0 0.0
    %330 = vmatpush1.xpose.msra.mxu0 0.0
    %331 = vmatprep.subr.mxu0 0.0
    %332 = vmatpush1.xpose.msra.mxu0 0.0
    %333 = vmatprep.subr.mxu0 0.0
    %334 = vmatpush1.xpose.msra.mxu0 0.0
    %335 = vmatprep.subr.mxu0 0.0
    %336 = vmatpush1.xpose.msra.mxu0 0.0
    %337 = vmatprep.subr.mxu0 0.0
    %338 = vmatpush1.xpose.msra.mxu0 0.0
    %339 = vmatprep.subr.mxu0 0.0
    %340 = vmatpush1.xpose.msra.mxu0 0.0
    %341 = vmatprep.subr.mxu0 0.0
    %342 = vmatpush1.xpose.msra.mxu0 0.0
    %343 = vmatprep.subr.mxu0 0.0
    %344 = vmatpush1.xpose.msra.mxu0 0.0
    %345 = vmatprep.subr.mxu0 0.0
    %346 = vmatpush1.xpose.msra.mxu0 0.0
    %347 = vmatprep.subr.mxu0 0.0
    %348 = vmatpush1.xpose.msra.mxu0 0.0
    %349 = vmatprep.subr.mxu0 0.0
    %350 = vmatpush1.xpose.msra.mxu0 0.0
    %351 = vmatprep.subr.mxu0 0.0
    %352 = vmatpush1.xpose.msra.mxu0 0.0
    %353 = vmatprep.mubr.f32.mxu0 0.0
    %354 = vmatmul.mubr.f32.gmra.mrb[0].mxu0 %v281
    %v355 = vpop.f32.mrb[0].mxu0
    %v356 = vadd.f32 %v85, %v355
    %v357 = vpop.f32.mrb[0].mxu0
    %358 = vmatprep.mubr.f32.mxu0 0.0
    %359 = vmatmul.mubr.f32.gmra.mrb[0].mxu0 %v283
    %v360 = vpop.f32.mrb[0].mxu0
    %v361 = vadd.f32 %v86, %v360
    %v362 = vpop.f32.mrb[0].mxu0
    %363 = vdwg.mxu0
    %v364 = vsel %vm191, %v267, -inf
    %365 = vmax.xlane.f32.xlu0 %v364
    %v366 = vpop.xlane.xlu0 %365
    %v367 = vsel %vm191, %v272, -inf
    %368 = vmax.xlane.f32.xlu0 %v367
    %v369 = vpop.xlane.xlu0 %368
    %v370 = vsel %vm191, %v356, -inf
    %371 = vmax.xlane.f32.xlu0 %v370
    %v372 = vpop.xlane.xlu0 %371
    %v373 = vsel %vm191, %v361, -inf
    %374 = vmax.xlane.f32.xlu0 %v373
    %v375 = vpop.xlane.xlu0 %374
    %v376 = vsub.f32 %v267, %v366
    %v377 = vsub.f32 %v272, %v369
    %v378 = vsub.f32 %v356, %v372
    %v379 = vsub.f32 %v361, %v375
    %v380 = vmul.f32 %v376, 1.442695
    %v381 = vpow.pop %v380
    %v382 = vmul.f32 %v377, 1.442695
    %v383 = vpow.pop %v382
    %v384 = vmul.f32 %v378, 1.442695
    %v385 = vpow.pop %v384
    %v386 = vmul.f32 %v379, 1.442695
    %v387 = vpow.pop %v386
    %v388 = vsel %vm191, %v381, 0.0
    %389 = vadd.xlane.f32.xlu0 %v388
    %v390 = vpop.xlane.xlu0 %389
    %v391 = vsel %vm191, %v383, 0.0
    %392 = vadd.xlane.f32.xlu0 %v391
    %v393 = vpop.xlane.xlu0 %392
    %v394 = vsel %vm191, %v385, 0.0
    %395 = vadd.xlane.f32.xlu0 %v394
    %v396 = vpop.xlane.xlu0 %395
    %v397 = vsel %vm191, %v387, 0.0
    %398 = vadd.xlane.f32.xlu0 %v397
    %v399 = vpop.xlane.xlu0 %398
    %v400 = vrcp.pop %v390
    %v401 = vrcp.pop %v393
    %v402 = vrcp.pop %v396
    %v403 = vrcp.pop %v399
    %v404 = vmul.f32 %v381, %v400
    %v405 = vmul.f32 %v383, %v401
    %v406 = vmul.f32 %v385, %v402
    %v407 = vmul.f32 %v387, %v403
    %408 = vrot.lane.b32.xlu0 %v167, 64
    %v409 = vpop.permute.xlu0 %408
    %410 = vrot.lane.b32.xlu0 %v172, 64
    %v411 = vpop.permute.xlu0 %410
    %v415 = vsel %vm191, %v404, 0
    %v418 = vsel %vm191, %v405, 0
    %420 = vmatprep.subr.mxu0 0.0
    %421 = vmatpush1.msra.mxu0 %v409
    %422 = vmatprep.subr.mxu0 0.0
    %423 = vmatpush1.msra.mxu0 %v411
    %424 = vmatprep.subr.mxu0 0.0
    %425 = vmatpush1.msra.mxu0 0.0
    %426 = vmatprep.subr.mxu0 0.0
    %427 = vmatpush1.msra.mxu0 0.0
    %428 = vmatprep.subr.mxu0 0.0
    %429 = vmatpush1.msra.mxu0 0.0
    %430 = vmatprep.subr.mxu0 0.0
    %431 = vmatpush1.msra.mxu0 0.0
    %432 = vmatprep.subr.mxu0 0.0
    %433 = vmatpush1.msra.mxu0 0.0
    %434 = vmatprep.subr.mxu0 0.0
    %435 = vmatpush1.msra.mxu0 0.0
    %436 = vmatprep.subr.mxu0 0.0
    %437 = vmatpush1.msra.mxu0 0.0
    %438 = vmatprep.subr.mxu0 0.0
    %439 = vmatpush1.msra.mxu0 0.0
    %440 = vmatprep.subr.mxu0 0.0
    %441 = vmatpush1.msra.mxu0 0.0
    %442 = vmatprep.subr.mxu0 0.0
    %443 = vmatpush1.msra.mxu0 0.0
    %444 = vmatprep.subr.mxu0 0.0
    %445 = vmatpush1.msra.mxu0 0.0
    %446 = vmatprep.subr.mxu0 0.0
    %447 = vmatpush1.msra.mxu0 0.0
    %448 = vmatprep.subr.mxu0 0.0
    %449 = vmatpush1.msra.mxu0 0.0
    %450 = vmatprep.subr.mxu0 0.0
    %451 = vmatpush1.msra.mxu0 0.0
    %452 = vmatprep.subr.mxu0 0.0
    %453 = vmatpush1.msra.mxu0 0.0
    %454 = vmatprep.subr.mxu0 0.0
    %455 = vmatpush1.msra.mxu0 0.0
    %456 = vmatprep.subr.mxu0 0.0
    %457 = vmatpush1.msra.mxu0 0.0
    %458 = vmatprep.subr.mxu0 0.0
    %459 = vmatpush1.msra.mxu0 0.0
    %460 = vmatprep.subr.mxu0 0.0
    %461 = vmatpush1.msra.mxu0 0.0
    %462 = vmatprep.subr.mxu0 0.0
    %463 = vmatpush1.msra.mxu0 0.0
    %464 = vmatprep.subr.mxu0 0.0
    %465 = vmatpush1.msra.mxu0 0.0
    %466 = vmatprep.subr.mxu0 0.0
    %467 = vmatpush1.msra.mxu0 0.0
    %468 = vmatprep.subr.mxu0 0.0
    %469 = vmatpush1.msra.mxu0 0.0
    %470 = vmatprep.subr.mxu0 0.0
    %471 = vmatpush1.msra.mxu0 0.0
    %472 = vmatprep.subr.mxu0 0.0
    %473 = vmatpush1.msra.mxu0 0.0
    %474 = vmatprep.subr.mxu0 0.0
    %475 = vmatpush1.msra.mxu0 0.0
    %476 = vmatprep.subr.mxu0 0.0
    %477 = vmatpush1.msra.mxu0 0.0
    %478 = vmatprep.subr.mxu0 0.0
    %479 = vmatpush1.msra.mxu0 0.0
    %480 = vmatprep.subr.mxu0 0.0
    %481 = vmatpush1.msra.mxu0 0.0
    %482 = vmatprep.subr.mxu0 0.0
    %483 = vmatpush1.msra.mxu0 0.0
    %484 = vmatprep.mubr.f32.mxu0 0.0
    %485 = vmatmul.mubr.f32.gmra.mrb[0].mxu0 %v415
    %v486 = vpop.f32.mrb[0].mxu0
    %v487 = vadd.f32 0.0, %v486
    %v488 = vpop.f32.mrb[0].mxu0
    %489 = vmatprep.mubr.f32.mxu0 0.0
    %490 = vmatmul.mubr.f32.gmra.mrb[0].mxu0 %v418
    %v491 = vpop.f32.mrb[0].mxu0
    %v492 = vadd.f32 0.0, %v491
    %v493 = vpop.f32.mrb[0].mxu0
    %494 = vdwg.mxu0
    %495 = vrot.lane.b32.xlu0 %v177, 64
    %v496 = vpop.permute.xlu0 %495
    %497 = vrot.lane.b32.xlu0 %v182, 64
    %v498 = vpop.permute.xlu0 %497
    %v502 = vsel %vm191, %v406, 0
    %v505 = vsel %vm191, %v407, 0
    %507 = vmatprep.subr.mxu0 0.0
    %508 = vmatpush1.msra.mxu0 %v496
    %509 = vmatprep.subr.mxu0 0.0
    %510 = vmatpush1.msra.mxu0 %v498
    %511 = vmatprep.subr.mxu0 0.0
    %512 = vmatpush1.msra.mxu0 0.0
    %513 = vmatprep.subr.mxu0 0.0
    %514 = vmatpush1.msra.mxu0 0.0
    %515 = vmatprep.subr.mxu0 0.0
    %516 = vmatpush1.msra.mxu0 0.0
    %517 = vmatprep.subr.mxu0 0.0
    %518 = vmatpush1.msra.mxu0 0.0
    %519 = vmatprep.subr.mxu0 0.0
    %520 = vmatpush1.msra.mxu0 0.0
    %521 = vmatprep.subr.mxu0 0.0
    %522 = vmatpush1.msra.mxu0 0.0
    %523 = vmatprep.subr.mxu0 0.0
    %524 = vmatpush1.msra.mxu0 0.0
    %525 = vmatprep.subr.mxu0 0.0
    %526 = vmatpush1.msra.mxu0 0.0
    %527 = vmatprep.subr.mxu0 0.0
    %528 = vmatpush1.msra.mxu0 0.0
    %529 = vmatprep.subr.mxu0 0.0
    %530 = vmatpush1.msra.mxu0 0.0
    %531 = vmatprep.subr.mxu0 0.0
    %532 = vmatpush1.msra.mxu0 0.0
    %533 = vmatprep.subr.mxu0 0.0
    %534 = vmatpush1.msra.mxu0 0.0
    %535 = vmatprep.subr.mxu0 0.0
    %536 = vmatpush1.msra.mxu0 0.0
    %537 = vmatprep.subr.mxu0 0.0
    %538 = vmatpush1.msra.mxu0 0.0
    %539 = vmatprep.subr.mxu0 0.0
    %540 = vmatpush1.msra.mxu0 0.0
    %541 = vmatprep.subr.mxu0 0.0
    %542 = vmatpush1.msra.mxu0 0.0
    %543 = vmatprep.subr.mxu0 0.0
    %544 = vmatpush1.msra.mxu0 0.0
    %545 = vmatprep.subr.mxu0 0.0
    %546 = vmatpush1.msra.mxu0 0.0
    %547 = vmatprep.subr.mxu0 0.0
    %548 = vmatpush1.msra.mxu0 0.0
    %549 = vmatprep.subr.mxu0 0.0
    %550 = vmatpush1.msra.mxu0 0.0
    %551 = vmatprep.subr.mxu0 0.0
    %552 = vmatpush1.msra.mxu0 0.0
    %553 = vmatprep.subr.mxu0 0.0
    %554 = vmatpush1.msra.mxu0 0.0
    %555 = vmatprep.subr.mxu0 0.0
    %556 = vmatpush1.msra.mxu0 0.0
    %557 = vmatprep.subr.mxu0 0.0
    %558 = vmatpush1.msra.mxu0 0.0
    %559 = vmatprep.subr.mxu0 0.0
    %560 = vmatpush1.msra.mxu0 0.0
    %561 = vmatprep.subr.mxu0 0.0
    %562 = vmatpush1.msra.mxu0 0.0
    %563 = vmatprep.subr.mxu0 0.0
    %564 = vmatpush1.msra.mxu0 0.0
    %565 = vmatprep.subr.mxu0 0.0
    %566 = vmatpush1.msra.mxu0 0.0
    %567 = vmatprep.subr.mxu0 0.0
    %568 = vmatpush1.msra.mxu0 0.0
    %569 = vmatprep.subr.mxu0 0.0
    %570 = vmatpush1.msra.mxu0 0.0
    %571 = vmatprep.mubr.f32.mxu0 0.0
    %572 = vmatmul.mubr.f32.gmra.mrb[0].mxu0 %v502
    %v573 = vpop.f32.mrb[0].mxu0
    %v574 = vadd.f32 0.0, %v573
    %v575 = vpop.f32.mrb[0].mxu0
    %576 = vmatprep.mubr.f32.mxu0 0.0
    %577 = vmatmul.mubr.f32.gmra.mrb[0].mxu0 %v505
    %v578 = vpop.f32.mrb[0].mxu0
    %v579 = vadd.f32 0.0, %v578
    %v580 = vpop.f32.mrb[0].mxu0
    %581 = vdwg.mxu0
    %582 = vrot.lane.b32.xlu0 %v167, 112
    %v583 = vpop.permute.xlu0 %582
    %584 = vrot.lane.b32.xlu0 %v172, 112
    %v585 = vpop.permute.xlu0 %584
    %586 = vrot.lane.b32.xlu0 %v167, 80
    %v587 = vpop.permute.xlu0 %586
    %588 = vrot.lane.b32.xlu0 %v172, 80
    %v589 = vpop.permute.xlu0 %588
    %v590 = vsel %vm191, %v583, 0
    %v592 = vsel %vm191, %v585, 0
    %v594 = vsel %vm191, %v587, 0
    %v596 = vsel %vm191, %v589, 0
    %598 = vmatprep.subr.mxu0 0.0
    %599 = vmatpush1.xpose.msra.mxu0 %v594
    %600 = vmatprep.subr.mxu0 0.0
    %601 = vmatpush1.xpose.msra.mxu0 %v596
    %602 = vmatprep.subr.mxu0 0.0
    %603 = vmatpush1.xpose.msra.mxu0 0.0
    %604 = vmatprep.subr.mxu0 0.0
    %605 = vmatpush1.xpose.msra.mxu0 0.0
    %606 = vmatprep.subr.mxu0 0.0
    %607 = vmatpush1.xpose.msra.mxu0 0.0
    %608 = vmatprep.subr.mxu0 0.0
    %609 = vmatpush1.xpose.msra.mxu0 0.0
    %610 = vmatprep.subr.mxu0 0.0
    %611 = vmatpush1.xpose.msra.mxu0 0.0
    %612 = vmatprep.subr.mxu0 0.0
    %613 = vmatpush1.xpose.msra.mxu0 0.0
    %614 = vmatprep.subr.mxu0 0.0
    %615 = vmatpush1.xpose.msra.mxu0 0.0
    %616 = vmatprep.subr.mxu0 0.0
    %617 = vmatpush1.xpose.msra.mxu0 0.0
    %618 = vmatprep.subr.mxu0 0.0
    %619 = vmatpush1.xpose.msra.mxu0 0.0
    %620 = vmatprep.subr.mxu0 0.0
    %621 = vmatpush1.xpose.msra.mxu0 0.0
    %622 = vmatprep.subr.mxu0 0.0
    %623 = vmatpush1.xpose.msra.mxu0 0.0
    %624 = vmatprep.subr.mxu0 0.0
    %625 = vmatpush1.xpose.msra.mxu0 0.0
    %626 = vmatprep.subr.mxu0 0.0
    %627 = vmatpush1.xpose.msra.mxu0 0.0
    %628 = vmatprep.subr.mxu0 0.0
    %629 = vmatpush1.xpose.msra.mxu0 0.0
    %630 = vmatprep.subr.mxu0 0.0
    %631 = vmatpush1.xpose.msra.mxu0 0.0
    %632 = vmatprep.subr.mxu0 0.0
    %633 = vmatpush1.xpose.msra.mxu0 0.0
    %634 = vmatprep.subr.mxu0 0.0
    %635 = vmatpush1.xpose.msra.mxu0 0.0
    %636 = vmatprep.subr.mxu0 0.0
    %637 = vmatpush1.xpose.msra.mxu0 0.0
    %638 = vmatprep.subr.mxu0 0.0
    %639 = vmatpush1.xpose.msra.mxu0 0.0
    %640 = vmatprep.subr.mxu0 0.0
    %641 = vmatpush1.xpose.msra.mxu0 0.0
    %642 = vmatprep.subr.mxu0 0.0
    %643 = vmatpush1.xpose.msra.mxu0 0.0
    %644 = vmatprep.subr.mxu0 0.0
    %645 = vmatpush1.xpose.msra.mxu0 0.0
    %646 = vmatprep.subr.mxu0 0.0
    %647 = vmatpush1.xpose.msra.mxu0 0.0
    %648 = vmatprep.subr.mxu0 0.0
    %649 = vmatpush1.xpose.msra.mxu0 0.0
    %650 = vmatprep.subr.mxu0 0.0
    %651 = vmatpush1.xpose.msra.mxu0 0.0
    %652 = vmatprep.subr.mxu0 0.0
    %653 = vmatpush1.xpose.msra.mxu0 0.0
    %654 = vmatprep.subr.mxu0 0.0
    %655 = vmatpush1.xpose.msra.mxu0 0.0
    %656 = vmatprep.subr.mxu0 0.0
    %657 = vmatpush1.xpose.msra.mxu0 0.0
    %658 = vmatprep.subr.mxu0 0.0
    %659 = vmatpush1.xpose.msra.mxu0 0.0
    %660 = vmatprep.subr.mxu0 0.0
    %661 = vmatpush1.xpose.msra.mxu0 0.0
    %662 = vmatprep.mubr.f32.mxu0 0.0
    %663 = vmatmul.mubr.f32.gmra.mrb[0].mxu0 %v590
    %v664 = vpop.f32.mrb[0].mxu0
    %v665 = vadd.f32 %v85, %v664
    %v666 = vpop.f32.mrb[0].mxu0
    %667 = vmatprep.mubr.f32.mxu0 0.0
    %668 = vmatmul.mubr.f32.gmra.mrb[0].mxu0 %v592
    %v669 = vpop.f32.mrb[0].mxu0
    %v670 = vadd.f32 %v86, %v669
    %v671 = vpop.f32.mrb[0].mxu0
    %672 = vdwg.mxu0
    %673 = vrot.lane.b32.xlu0 %v177, 112
    %v674 = vpop.permute.xlu0 %673
    %675 = vrot.lane.b32.xlu0 %v182, 112
    %v676 = vpop.permute.xlu0 %675
    %677 = vrot.lane.b32.xlu0 %v177, 80
    %v678 = vpop.permute.xlu0 %677
    %679 = vrot.lane.b32.xlu0 %v182, 80
    %v680 = vpop.permute.xlu0 %679
    %v681 = vsel %vm191, %v674, 0
    %v683 = vsel %vm191, %v676, 0
    %v685 = vsel %vm191, %v678, 0
    %v687 = vsel %vm191, %v680, 0
    %689 = vmatprep.subr.mxu0 0.0
    %690 = vmatpush1.xpose.msra.mxu0 %v685
    %691 = vmatprep.subr.mxu0 0.0
    %692 = vmatpush1.xpose.msra.mxu0 %v687
    %693 = vmatprep.subr.mxu0 0.0
    %694 = vmatpush1.xpose.msra.mxu0 0.0
    %695 = vmatprep.subr.mxu0 0.0
    %696 = vmatpush1.xpose.msra.mxu0 0.0
    %697 = vmatprep.subr.mxu0 0.0
    %698 = vmatpush1.xpose.msra.mxu0 0.0
    %699 = vmatprep.subr.mxu0 0.0
    %700 = vmatpush1.xpose.msra.mxu0 0.0
    %701 = vmatprep.subr.mxu0 0.0
    %702 = vmatpush1.xpose.msra.mxu0 0.0
    %703 = vmatprep.subr.mxu0 0.0
    %704 = vmatpush1.xpose.msra.mxu0 0.0
    %705 = vmatprep.subr.mxu0 0.0
    %706 = vmatpush1.xpose.msra.mxu0 0.0
    %707 = vmatprep.subr.mxu0 0.0
    %708 = vmatpush1.xpose.msra.mxu0 0.0
    %709 = vmatprep.subr.mxu0 0.0
    %710 = vmatpush1.xpose.msra.mxu0 0.0
    %711 = vmatprep.subr.mxu0 0.0
    %712 = vmatpush1.xpose.msra.mxu0 0.0
    %713 = vmatprep.subr.mxu0 0.0
    %714 = vmatpush1.xpose.msra.mxu0 0.0
    %715 = vmatprep.subr.mxu0 0.0
    %716 = vmatpush1.xpose.msra.mxu0 0.0
    %717 = vmatprep.subr.mxu0 0.0
    %718 = vmatpush1.xpose.msra.mxu0 0.0
    %719 = vmatprep.subr.mxu0 0.0
    %720 = vmatpush1.xpose.msra.mxu0 0.0
    %721 = vmatprep.subr.mxu0 0.0
    %722 = vmatpush1.xpose.msra.mxu0 0.0
    %723 = vmatprep.subr.mxu0 0.0
    %724 = vmatpush1.xpose.msra.mxu0 0.0
    %725 = vmatprep.subr.mxu0 0.0
    %726 = vmatpush1.xpose.msra.mxu0 0.0
    %727 = vmatprep.subr.mxu0 0.0
    %728 = vmatpush1.xpose.msra.mxu0 0.0
    %729 = vmatprep.subr.mxu0 0.0
    %730 = vmatpush1.xpose.msra.mxu0 0.0
    %731 = vmatprep.subr.mxu0 0.0
    %732 = vmatpush1.xpose.msra.mxu0 0.0
    %733 = vmatprep.subr.mxu0 0.0
    %734 = vmatpush1.xpose.msra.mxu0 0.0
    %735 = vmatprep.subr.mxu0 0.0
    %736 = vmatpush1.xpose.msra.mxu0 0.0
    %737 = vmatprep.subr.mxu0 0.0
    %738 = vmatpush1.xpose.msra.mxu0 0.0
    %739 = vmatprep.subr.mxu0 0.0
    %740 = vmatpush1.xpose.msra.mxu0 0.0
    %741 = vmatprep.subr.mxu0 0.0
    %742 = vmatpush1.xpose.msra.mxu0 0.0
    %743 = vmatprep.subr.mxu0 0.0
    %744 = vmatpush1.xpose.msra.mxu0 0.0
    %745 = vmatprep.subr.mxu0 0.0
    %746 = vmatpush1.xpose.msra.mxu0 0.0
    %747 = vmatprep.subr.mxu0 0.0
    %748 = vmatpush1.xpose.msra.mxu0 0.0
    %749 = vmatprep.subr.mxu0 0.0
    %750 = vmatpush1.xpose.msra.mxu0 0.0
    %751 = vmatprep.subr.mxu0 0.0
    %752 = vmatpush1.xpose.msra.mxu0 0.0
    %753 = vmatprep.mubr.f32.mxu0 0.0
    %754 = vmatmul.mubr.f32.gmra.mrb[0].mxu0 %v681
    %v755 = vpop.f32.mrb[0].mxu0
    %v756 = vadd.f32 %v85, %v755
    %v757 = vpop.f32.mrb[0].mxu0
    %758 = vmatprep.mubr.f32.mxu0 0.0
    %759 = vmatmul.mubr.f32.gmra.mrb[0].mxu0 %v683
    %v760 = vpop.f32.mrb[0].mxu0
    %v761 = vadd.f32 %v86, %v760
    %v762 = vpop.f32.mrb[0].mxu0
    %763 = vdwg.mxu0
    %v764 = vsel %vm191, %v665, -inf
    %765 = vmax.xlane.f32.xlu0 %v764
    %v766 = vpop.xlane.xlu0 %765
    %v767 = vsel %vm191, %v670, -inf
    %768 = vmax.xlane.f32.xlu0 %v767
    %v769 = vpop.xlane.xlu0 %768
    %v770 = vsel %vm191, %v756, -inf
    %771 = vmax.xlane.f32.xlu0 %v770
    %v772 = vpop.xlane.xlu0 %771
    %v773 = vsel %vm191, %v761, -inf
    %774 = vmax.xlane.f32.xlu0 %v773
    %v775 = vpop.xlane.xlu0 %774
    %v776 = vsub.f32 %v665, %v766
    %v777 = vsub.f32 %v670, %v769
    %v778 = vsub.f32 %v756, %v772
    %v779 = vsub.f32 %v761, %v775
    %v780 = vmul.f32 %v776, 1.442695
    %v781 = vpow.pop %v780
    %v782 = vmul.f32 %v777, 1.442695
    %v783 = vpow.pop %v782
    %v784 = vmul.f32 %v778, 1.442695
    %v785 = vpow.pop %v784
    %v786 = vmul.f32 %v779, 1.442695
    %v787 = vpow.pop %v786
    %v788 = vsel %vm191, %v781, 0.0
    %789 = vadd.xlane.f32.xlu0 %v788
    %v790 = vpop.xlane.xlu0 %789
    %v791 = vsel %vm191, %v783, 0.0
    %792 = vadd.xlane.f32.xlu0 %v791
    %v793 = vpop.xlane.xlu0 %792
    %v794 = vsel %vm191, %v785, 0.0
    %795 = vadd.xlane.f32.xlu0 %v794
    %v796 = vpop.xlane.xlu0 %795
    %v797 = vsel %vm191, %v787, 0.0
    %798 = vadd.xlane.f32.xlu0 %v797
    %v799 = vpop.xlane.xlu0 %798
    %v800 = vrcp.pop %v790
    %v801 = vrcp.pop %v793
    %v802 = vrcp.pop %v796
    %v803 = vrcp.pop %v799
    %v804 = vmul.f32 %v781, %v800
    %v805 = vmul.f32 %v783, %v801
    %v806 = vmul.f32 %v785, %v802
    %v807 = vmul.f32 %v787, %v803
    %808 = vrot.lane.b32.xlu0 %v167, 48
    %v809 = vpop.permute.xlu0 %808
    %810 = vrot.lane.b32.xlu0 %v172, 48
    %v811 = vpop.permute.xlu0 %810
    %v815 = vsel %vm191, %v804, 0
    %v818 = vsel %vm191, %v805, 0
    %820 = vmatprep.subr.mxu0 0.0
    %821 = vmatpush1.msra.mxu0 %v809
    %822 = vmatprep.subr.mxu0 0.0
    %823 = vmatpush1.msra.mxu0 %v811
    %824 = vmatprep.subr.mxu0 0.0
    %825 = vmatpush1.msra.mxu0 0.0
    %826 = vmatprep.subr.mxu0 0.0
    %827 = vmatpush1.msra.mxu0 0.0
    %828 = vmatprep.subr.mxu0 0.0
    %829 = vmatpush1.msra.mxu0 0.0
    %830 = vmatprep.subr.mxu0 0.0
    %831 = vmatpush1.msra.mxu0 0.0
    %832 = vmatprep.subr.mxu0 0.0
    %833 = vmatpush1.msra.mxu0 0.0
    %834 = vmatprep.subr.mxu0 0.0
    %835 = vmatpush1.msra.mxu0 0.0
    %836 = vmatprep.subr.mxu0 0.0
    %837 = vmatpush1.msra.mxu0 0.0
    %838 = vmatprep.subr.mxu0 0.0
    %839 = vmatpush1.msra.mxu0 0.0
    %840 = vmatprep.subr.mxu0 0.0
    %841 = vmatpush1.msra.mxu0 0.0
    %842 = vmatprep.subr.mxu0 0.0
    %843 = vmatpush1.msra.mxu0 0.0
    %844 = vmatprep.subr.mxu0 0.0
    %845 = vmatpush1.msra.mxu0 0.0
    %846 = vmatprep.subr.mxu0 0.0
    %847 = vmatpush1.msra.mxu0 0.0
    %848 = vmatprep.subr.mxu0 0.0
    %849 = vmatpush1.msra.mxu0 0.0
    %850 = vmatprep.subr.mxu0 0.0
    %851 = vmatpush1.msra.mxu0 0.0
    %852 = vmatprep.subr.mxu0 0.0
    %853 = vmatpush1.msra.mxu0 0.0
    %854 = vmatprep.subr.mxu0 0.0
    %855 = vmatpush1.msra.mxu0 0.0
    %856 = vmatprep.subr.mxu0 0.0
    %857 = vmatpush1.msra.mxu0 0.0
    %858 = vmatprep.subr.mxu0 0.0
    %859 = vmatpush1.msra.mxu0 0.0
    %860 = vmatprep.subr.mxu0 0.0
    %861 = vmatpush1.msra.mxu0 0.0
    %862 = vmatprep.subr.mxu0 0.0
    %863 = vmatpush1.msra.mxu0 0.0
    %864 = vmatprep.subr.mxu0 0.0
    %865 = vmatpush1.msra.mxu0 0.0
    %866 = vmatprep.subr.mxu0 0.0
    %867 = vmatpush1.msra.mxu0 0.0
    %868 = vmatprep.subr.mxu0 0.0
    %869 = vmatpush1.msra.mxu0 0.0
    %870 = vmatprep.subr.mxu0 0.0
    %871 = vmatpush1.msra.mxu0 0.0
    %872 = vmatprep.subr.mxu0 0.0
    %873 = vmatpush1.msra.mxu0 0.0
    %874 = vmatprep.subr.mxu0 0.0
    %875 = vmatpush1.msra.mxu0 0.0
    %876 = vmatprep.subr.mxu0 0.0
    %877 = vmatpush1.msra.mxu0 0.0
    %878 = vmatprep.subr.mxu0 0.0
    %879 = vmatpush1.msra.mxu0 0.0
    %880 = vmatprep.subr.mxu0 0.0
    %881 = vmatpush1.msra.mxu0 0.0
    %882 = vmatprep.subr.mxu0 0.0
    %883 = vmatpush1.msra.mxu0 0.0
    %884 = vmatprep.mubr.f32.mxu0 0.0
    %885 = vmatmul.mubr.f32.gmra.mrb[0].mxu0 %v815
    %v886 = vpop.f32.mrb[0].mxu0
    %v887 = vadd.f32 0.0, %v886
    %v888 = vpop.f32.mrb[0].mxu0
    %889 = vmatprep.mubr.f32.mxu0 0.0
    %890 = vmatmul.mubr.f32.gmra.mrb[0].mxu0 %v818
    %v891 = vpop.f32.mrb[0].mxu0
    %v892 = vadd.f32 0.0, %v891
    %v893 = vpop.f32.mrb[0].mxu0
    %894 = vdwg.mxu0
    %895 = vrot.lane.b32.xlu0 %v177, 48
    %v896 = vpop.permute.xlu0 %895
    %897 = vrot.lane.b32.xlu0 %v182, 48
    %v898 = vpop.permute.xlu0 %897
    %v902 = vsel %vm191, %v806, 0
    %v905 = vsel %vm191, %v807, 0
    %907 = vmatprep.subr.mxu0 0.0
    %908 = vmatpush1.msra.mxu0 %v896
    %909 = vmatprep.subr.mxu0 0.0
    %910 = vmatpush1.msra.mxu0 %v898
    %911 = vmatprep.subr.mxu0 0.0
    %912 = vmatpush1.msra.mxu0 0.0
    %913 = vmatprep.subr.mxu0 0.0
    %914 = vmatpush1.msra.mxu0 0.0
    %915 = vmatprep.subr.mxu0 0.0
    %916 = vmatpush1.msra.mxu0 0.0
    %917 = vmatprep.subr.mxu0 0.0
    %918 = vmatpush1.msra.mxu0 0.0
    %919 = vmatprep.subr.mxu0 0.0
    %920 = vmatpush1.msra.mxu0 0.0
    %921 = vmatprep.subr.mxu0 0.0
    %922 = vmatpush1.msra.mxu0 0.0
    %923 = vmatprep.subr.mxu0 0.0
    %924 = vmatpush1.msra.mxu0 0.0
    %925 = vmatprep.subr.mxu0 0.0
    %926 = vmatpush1.msra.mxu0 0.0
    %927 = vmatprep.subr.mxu0 0.0
    %928 = vmatpush1.msra.mxu0 0.0
    %929 = vmatprep.subr.mxu0 0.0
    %930 = vmatpush1.msra.mxu0 0.0
    %931 = vmatprep.subr.mxu0 0.0
    %932 = vmatpush1.msra.mxu0 0.0
    %933 = vmatprep.subr.mxu0 0.0
    %934 = vmatpush1.msra.mxu0 0.0
    %935 = vmatprep.subr.mxu0 0.0
    %936 = vmatpush1.msra.mxu0 0.0
    %937 = vmatprep.subr.mxu0 0.0
    %938 = vmatpush1.msra.mxu0 0.0
    %939 = vmatprep.subr.mxu0 0.0
    %940 = vmatpush1.msra.mxu0 0.0
    %941 = vmatprep.subr.mxu0 0.0
    %942 = vmatpush1.msra.mxu0 0.0
    %943 = vmatprep.subr.mxu0 0.0
    %944 = vmatpush1.msra.mxu0 0.0
    %945 = vmatprep.subr.mxu0 0.0
    %946 = vmatpush1.msra.mxu0 0.0
    %947 = vmatprep.subr.mxu0 0.0
    %948 = vmatpush1.msra.mxu0 0.0
    %949 = vmatprep.subr.mxu0 0.0
    %950 = vmatpush1.msra.mxu0 0.0
    %951 = vmatprep.subr.mxu0 0.0
    %952 = vmatpush1.msra.mxu0 0.0
    %953 = vmatprep.subr.mxu0 0.0
    %954 = vmatpush1.msra.mxu0 0.0
    %955 = vmatprep.subr.mxu0 0.0
    %956 = vmatpush1.msra.mxu0 0.0
    %957 = vmatprep.subr.mxu0 0.0
    %958 = vmatpush1.msra.mxu0 0.0
    %959 = vmatprep.subr.mxu0 0.0
    %960 = vmatpush1.msra.mxu0 0.0
    %961 = vmatprep.subr.mxu0 0.0
    %962 = vmatpush1.msra.mxu0 0.0
    %963 = vmatprep.subr.mxu0 0.0
    %964 = vmatpush1.msra.mxu0 0.0
    %965 = vmatprep.subr.mxu0 0.0
    %966 = vmatpush1.msra.mxu0 0.0
    %967 = vmatprep.subr.mxu0 0.0
    %968 = vmatpush1.msra.mxu0 0.0
    %969 = vmatprep.subr.mxu0 0.0
    %970 = vmatpush1.msra.mxu0 0.0
    %971 = vmatprep.mubr.f32.mxu0 0.0
    %972 = vmatmul.mubr.f32.gmra.mrb[0].mxu0 %v902
    %v973 = vpop.f32.mrb[0].mxu0
    %v974 = vadd.f32 0.0, %v973
    %v975 = vpop.f32.mrb[0].mxu0
    %976 = vmatprep.mubr.f32.mxu0 0.0
    %977 = vmatmul.mubr.f32.gmra.mrb[0].mxu0 %v905
    %v978 = vpop.f32.mrb[0].mxu0
    %v979 = vadd.f32 0.0, %v978
    %v980 = vpop.f32.mrb[0].mxu0
    %981 = vdwg.mxu0
    %986 = vrot.lane.b32.xlu0 %v887, 16
    %v987 = vpop.permute.xlu0 %986
    %988 = vrot.lane.b32.xlu0 %v892, 16
    %v989 = vpop.permute.xlu0 %988
    %990 = vrot.lane.b32.xlu0 %v974, 16
    %v991 = vpop.permute.xlu0 %990
    %992 = vrot.lane.b32.xlu0 %v979, 16
    %v993 = vpop.permute.xlu0 %992
    %v998 = vsel %vm191, %v487, %v987
    %v999 = vsel %vm191, %v492, %v989
    %v1000 = vsel %vm191, %v574, %v991
    %v1001 = vsel %vm191, %v579, %v993
    %v1003 = vsel %vm87, %v998, 0
    %v1006 = vsel %vm87, %v999, 0
    %v1009 = vsel %vm87, %v1000, 0
    %v1012 = vsel %vm87, %v1001, 0
    %1014 = vmatprep.subr.mxu0 0.0
    %1015 = vmatpush1.msra.mxu0 %v81
    %1016 = vmatprep.subr.mxu0 0.0
    %1017 = vmatpush1.msra.mxu0 %v82
    %1018 = vmatprep.subr.mxu0 0.0
    %1019 = vmatpush1.msra.mxu0 %v83
    %1020 = vmatprep.subr.mxu0 0.0
    %1021 = vmatpush1.msra.mxu0 %v84
    %1022 = vmatprep.subr.mxu0 0.0
    %1023 = vmatpush1.msra.mxu0 0.0
    %1024 = vmatprep.subr.mxu0 0.0
    %1025 = vmatpush1.msra.mxu0 0.0
    %1026 = vmatprep.subr.mxu0 0.0
    %1027 = vmatpush1.msra.mxu0 0.0
    %1028 = vmatprep.subr.mxu0 0.0
    %1029 = vmatpush1.msra.mxu0 0.0
    %1030 = vmatprep.subr.mxu0 0.0
    %1031 = vmatpush1.msra.mxu0 0.0
    %1032 = vmatprep.subr.mxu0 0.0
    %1033 = vmatpush1.msra.mxu0 0.0
    %1034 = vmatprep.subr.mxu0 0.0
    %1035 = vmatpush1.msra.mxu0 0.0
    %1036 = vmatprep.subr.mxu0 0.0
    %1037 = vmatpush1.msra.mxu0 0.0
    %1038 = vmatprep.subr.mxu0 0.0
    %1039 = vmatpush1.msra.mxu0 0.0
    %1040 = vmatprep.subr.mxu0 0.0
    %1041 = vmatpush1.msra.mxu0 0.0
    %1042 = vmatprep.subr.mxu0 0.0
    %1043 = vmatpush1.msra.mxu0 0.0
    %1044 = vmatprep.subr.mxu0 0.0
    %1045 = vmatpush1.msra.mxu0 0.0
    %1046 = vmatprep.subr.mxu0 0.0
    %1047 = vmatpush1.msra.mxu0 0.0
    %1048 = vmatprep.subr.mxu0 0.0
    %1049 = vmatpush1.msra.mxu0 0.0
    %1050 = vmatprep.subr.mxu0 0.0
    %1051 = vmatpush1.msra.mxu0 0.0
    %1052 = vmatprep.subr.mxu0 0.0
    %1053 = vmatpush1.msra.mxu0 0.0
    %1054 = vmatprep.subr.mxu0 0.0
    %1055 = vmatpush1.msra.mxu0 0.0
    %1056 = vmatprep.subr.mxu0 0.0
    %1057 = vmatpush1.msra.mxu0 0.0
    %1058 = vmatprep.subr.mxu0 0.0
    %1059 = vmatpush1.msra.mxu0 0.0
    %1060 = vmatprep.subr.mxu0 0.0
    %1061 = vmatpush1.msra.mxu0 0.0
    %1062 = vmatprep.subr.mxu0 0.0
    %1063 = vmatpush1.msra.mxu0 0.0
    %1064 = vmatprep.subr.mxu0 0.0
    %1065 = vmatpush1.msra.mxu0 0.0
    %1066 = vmatprep.subr.mxu0 0.0
    %1067 = vmatpush1.msra.mxu0 0.0
    %1068 = vmatprep.subr.mxu0 0.0
    %1069 = vmatpush1.msra.mxu0 0.0
    %1070 = vmatprep.subr.mxu0 0.0
    %1071 = vmatpush1.msra.mxu0 0.0
    %1072 = vmatprep.subr.mxu0 0.0
    %1073 = vmatpush1.msra.mxu0 0.0
    %1074 = vmatprep.subr.mxu0 0.0
    %1075 = vmatpush1.msra.mxu0 0.0
    %1076 = vmatprep.subr.mxu0 0.0
    %1077 = vmatpush1.msra.mxu0 0.0
    %1078 = vmatprep.mubr.f32.mxu0 0.0
    %1079 = vmatmul.mubr.f32.gmra.mrb[0].mxu0 %v1003
    %v1080 = vpop.f32.mrb[0].mxu0
    %v1081 = vadd.f32 0.0, %v1080
    %v1082 = vpop.f32.mrb[0].mxu0
    %1083 = vmatprep.mubr.f32.mxu0 0.0
    %1084 = vmatmul.mubr.f32.gmra.mrb[0].mxu0 %v1006
    %v1085 = vpop.f32.mrb[0].mxu0
    %v1086 = vadd.f32 0.0, %v1085
    %v1087 = vpop.f32.mrb[0].mxu0
    %1088 = vmatprep.mubr.f32.mxu0 0.0
    %1089 = vmatmul.mubr.f32.gmra.mrb[0].mxu0 %v1009
    %v1090 = vpop.f32.mrb[0].mxu0
    %v1091 = vadd.f32 0.0, %v1090
    %v1092 = vpop.f32.mrb[0].mxu0
    %1093 = vmatprep.mubr.f32.mxu0 0.0
    %1094 = vmatmul.mubr.f32.gmra.mrb[0].mxu0 %v1012
    %v1095 = vpop.f32.mrb[0].mxu0
    %v1096 = vadd.f32 0.0, %v1095
    %v1097 = vpop.f32.mrb[0].mxu0
    %1098 = vdwg.mxu0
    %1099 = vst.msk [vmem:[#allocation10] sm:$0xff] %vm87, %v1081
    %1100 = vst.msk [vmem:[#allocation10 + $0x8] sm:$0xff] %vm87, %v1086
    %1101 = vst.msk [vmem:[#allocation10 + $0x10] sm:$0xff] %vm87, %v1091
    %1102 = vst.msk [vmem:[#allocation10 + $0x18] sm:$0xff] %vm87, %v1096
    // Predicated region
    $region34: #{tpu_custom_call.1} parent=1 // pred_check
      _
    $region35: #{tpu_custom_call.1} parent=1 // pred_check_branch
      %1104 = sbr.rel (0) target = $region37
    $region36: #{tpu_custom_call.1} parent=1 // pred_region
      %s1106 = ssub.s32 512, 512
      %1107 = vsyncadd [#allocation4], %s1106
      %s1108 = sshll.u32 [#allocation10], 4
      %s1109 = int_to_ptr.vmem [resolvable:$true] %s1108
      %1114 = dma.vmem_to_hbm [thread:$0]  %s1109, 512, %s4, [#allocation4], 128, 128, 8
    $region37: #{tpu_custom_call.1} parent=1 // pred_fallthru
      _
    // Predicated region
    $region38: #{tpu_custom_call.1} parent=1 // pred_check
      _
    $region39: #{tpu_custom_call.1} parent=1 // pred_check_branch
      %1116 = sbr.rel (0) target = $region41
    $region40: #{tpu_custom_call.1} parent=1 // pred_region
      %1117 = dma.done [#allocation4], 512
    $region41: #{tpu_custom_call.1} parent=1 // pred_fallthru
      _
    %1118 = vsyncpa [#allocation3], 1
    %1119 = vsyncpa [#allocation6], 1
    %1120 = vsyncpa [#allocation9], 1
    %1121 = vsyncpa [#allocation4], 1

</llo_original>
